<compile_context>
chip_gen: v7x
topology: tpu7x:2x2x1
jax: 0.10.0
libtpu: 0.0.40
codegen_flags: <defaults>
</compile_context>

<pallas_src>
import functools

import jax
import jax.numpy as jnp
from jax.experimental import pallas as pl
from jax.experimental.pallas import tpu as pltpu


_NEG = -1e30          # bias fill for padded label columns (finite, bf16-representable)
_IGNORE = -100        # CrossEntropyLoss ignore_index


def _round_up(x, m):
    return ((x + m - 1) // m) * m


def _vmem_budget():
    """Generation-aware (working-set budget, vmem_limit_bytes)."""
    cap = None
    try:
        if hasattr(pltpu, "get_tpu_info"):
            cap = getattr(pltpu.get_tpu_info(), "vmem_capacity_bytes", None)
    except Exception:
        cap = None
    if not cap:
        cap = 64 * 1024 * 1024                    # assume smallest (v7x per-TC) VMEM
    if cap >= 100 * 1024 * 1024:                  # v5e / v6e: 128 MiB physical VMEM
        return 56 * 1024 * 1024, 96 * 1024 * 1024
    # v7x (64 MiB per TensorCore) or smaller/unknown: scale with capacity
    budget = min(36 * 1024 * 1024, int(cap * 5 // 8))
    limit = min(56 * 1024 * 1024, int(cap * 7 // 8))
    return budget, limit


# ----------------------------------------------------------------------------
# Shared body: per-layer classifier matmuls (MXU, bf16 native) weighted-summed
# in f32 — avoids materializing a (tile, H) f32 combined-activation temporary.
#   w_ref   : SMEM (L,)          softmax(layer_combination) weights (scalar prefetch)
#   hs_ref  : VMEM (L, tile, H)  tile of stacked hidden states (bf16 recommended)
#   wt_ref  : VMEM (H, Npad)     classifier weight^T, lane-padded, hs dtype
#   b_ref   : VMEM (1, Npad)     classifier bias, f32 (padded columns = -1e30)
# ----------------------------------------------------------------------------
def _weighted_logits(w_ref, hs_ref, wt_ref, b_ref):
    num_layers = hs_ref.shape[0]
    acc = w_ref[0] * jnp.dot(hs_ref[0], wt_ref[...],
                             preferred_element_type=jnp.float32)
    for l in range(1, num_layers):
        acc = acc + w_ref[l] * jnp.dot(hs_ref[l], wt_ref[...],
                                       preferred_element_type=jnp.float32)
    # TODO(synk): dropout omitted (inference semantics); train-mode dropout would
    # need pltpu.prng_seed / pltpu.stateful_bernoulli on the combined activation.
    return acc + b_ref[...]


def combine_classify_kernel(w_ref, hs_ref, wt_ref, b_ref, logits_ref):
    logits_ref[...] = _weighted_logits(w_ref, hs_ref, wt_ref, b_ref).astype(
        logits_ref.dtype)


def combine_classify_loss_kernel(w_ref, hs_ref, labels_ref, wt_ref, b_ref,
                                 logits_ref, parts_ref):
    logits = _weighted_logits(w_ref, hs_ref, wt_ref, b_ref)       # (tile, Npad) f32
    logits_ref[...] = logits.astype(logits_ref.dtype)

    # fused token-level cross-entropy partial sums (hidden under the hs DMA)
    labels = labels_ref[...]                                       # (tile, 1) int32
    m = jnp.max(logits, axis=-1, keepdims=True)
    lse = jnp.log(jnp.sum(jnp.exp(logits - m), axis=-1, keepdims=True)) + m
    col = jax.lax.broadcasted_iota(jnp.int32, logits.shape, 1)
    tgt = jnp.sum(jnp.where(col == labels, logits, 0.0), axis=-1, keepdims=True)
    valid = labels != _IGNORE                   # ragged/padded rows carry -100
    nll_sum = jnp.sum(jnp.where(valid, lse - tgt, 0.0))   # where() also kills any
    valid_sum = jnp.sum(valid.astype(jnp.float32))         # NaN from garbage rows

    # per-tile partial sums, lane 0 = sum(nll), lane 1 = sum(valid)
    lane = jax.lax.broadcasted_iota(jnp.int32, parts_ref.shape, 2)
    parts = jnp.where(lane == 0, nll_sum, 0.0)
    parts_ref[...] = jnp.where(lane == 1, valid_sum, parts)


# ----------------------------------------------------------------------------
# Wrapper
# ----------------------------------------------------------------------------
@functools.partial(jax.jit, static_argnames=("token_tile", "logits_dtype"))
def token_classifier_layer_combo(hidden_states, layer_combination, cls_w, cls_b,
                                 labels=None, *, token_tile=None,
                                 logits_dtype=jnp.float32):
    """hidden_states: (L, B, S, H) float (bf16 recommended: halves HBM traffic and
    gives the native bf16 MXU path); layer_combination: (L, 1, 1, 1) f32;
    cls_w: (N, H) f32 (PyTorch Linear layout); cls_b: (N,) f32;
    labels: optional (B, S) int32 with ignore_index=-100."""
    L, B, S, H = hidden_states.shape
    N = cls_w.shape[0]
    T = B * S
    Npad = _round_up(max(N, 128), 128)          # lane-dense output / MXU width
    hs_bytes = jnp.dtype(hidden_states.dtype).itemsize
    lg_bytes = jnp.dtype(logits_dtype).itemsize
    wt_dtype = hidden_states.dtype              # bf16 hs -> bf16 weight (native MXU)
    wt_bytes = jnp.dtype(wt_dtype).itemsize

    budget, vmem_limit = _vmem_budget()

    # ---- token tile: direct solve for the largest tile fitting the budget ----
    per_token = (2 * L * H * hs_bytes                 # hs tile, double-buffered
                 + 2 * Npad * lg_bytes                # logits tile, double-buffered
                 + Npad * 4                           # f32 accumulator headroom
                 + (2 * 128 * 4 if labels is not None else 0))   # labels (lane-pad)
    fixed = (H * Npad * wt_bytes + 8 * Npad * 4       # resident weight + bias (1x)
             + 2 * 8 * 128 * 4                        # loss partials
             + (1 << 20))                             # misc / compiler slack
    if token_tile is not None:
        tile = max(8, _round_up(int(token_tile), 8))
    else:
        tile = max(8, (budget - fixed) // per_token)
        tile = min(tile, _round_up(T, 8))
        if T > 8:                                     # >=2 grid steps: v7x megacore
            tile = min(tile, _round_up(-(-T // 2), 8))
        tile = (tile // 128) * 128 if tile >= 256 else (tile // 8) * 8
        tile = max(8, tile)
    num_tiles = -(-T // tile)

    # ---- tiny glue: softmax over L layer weights, lane-pad the classifier ----
    w = jax.nn.softmax(layer_combination.reshape(L).astype(jnp.float32), axis=0)
    hs = hidden_states.reshape(L, T, H)          # NO jnp.pad: ragged last tile OK
    wt = jnp.zeros((H, Npad), jnp.float32).at[:, :N].set(
        cls_w.T.astype(jnp.float32)).astype(wt_dtype)
    bias = jnp.full((1, Npad), _NEG, jnp.float32).at[0, :N].set(
        cls_b.astype(jnp.float32))

    hs_spec = pl.BlockSpec((L, tile, H), lambda i, w_ref: (0, i, 0))
    wt_spec = pl.BlockSpec((H, Npad), lambda i, w_ref: (0, 0))
    b_spec = pl.BlockSpec((1, Npad), lambda i, w_ref: (0, 0))
    logits_spec = pl.BlockSpec((tile, Npad), lambda i, w_ref: (i, 0))
    cparams = pltpu.CompilerParams(
        dimension_semantics=("parallel",),
        vmem_limit_bytes=int(vmem_limit),
    )

    if labels is None:
        logits_flat = pl.pallas_call(
            combine_classify_kernel,
            out_shape=jax.ShapeDtypeStruct((T, Npad), logits_dtype),
            grid_spec=pltpu.PrefetchScalarGridSpec(
                num_scalar_prefetch=1,               # w -> SMEM
                grid=(num_tiles,),
                in_specs=[hs_spec, wt_spec, b_spec],
                out_specs=logits_spec,
            ),
            compiler_params=cparams,
        )(w, hs, wt, bias)
        return {"logits": logits_flat[:, :N].reshape(B, S, N)}

    # pad ONLY the tiny labels array so ragged-tile rows read ignore_index
    T_pad = num_tiles * tile
    labels_2d = labels.reshape(T, 1).astype(jnp.int32)
    if T_pad != T:
        labels_2d = jnp.pad(labels_2d, ((0, T_pad - T), (0, 0)),
                            constant_values=_IGNORE)
    labels_spec = pl.BlockSpec((tile, 1), lambda i, w_ref: (i, 0))
    parts_spec = pl.BlockSpec((1, 1, 128), lambda i, w_ref: (i, 0, 0))

    logits_flat, parts = pl.pallas_call(
        combine_classify_loss_kernel,
        out_shape=(jax.ShapeDtypeStruct((T, Npad), logits_dtype),
                   jax.ShapeDtypeStruct((num_tiles, 1, 128), jnp.float32)),
        grid_spec=pltpu.PrefetchScalarGridSpec(
            num_scalar_prefetch=1,                   # w -> SMEM
            grid=(num_tiles,),
            in_specs=[hs_spec, labels_spec, wt_spec, b_spec],
            out_specs=(logits_spec, parts_spec),
        ),
        compiler_params=cparams,
    )(w, hs, labels_2d, wt, bias)

    # final reduction over per-tile partial sums (matches torch mean over valid;
    # all-ignored labels yield 0/0 -> NaN, same as CrossEntropyLoss)
    loss = jnp.sum(parts[:, 0, 0]) / jnp.sum(parts[:, 0, 1])
    return {"logits": logits_flat[:, :N].reshape(B, S, N), "loss": loss}


if __name__ == "__main__":
    # small, module-consistent shapes
    L, B, S, H, N = 4, 2, 8, 32, 8     # num_layers, batch, seq, hidden, num_labels

    key = jax.random.PRNGKey(0)
    k_hs, k_w, k_b, k_lab = jax.random.split(key, 4)

    # bf16 hidden states (mem-bound kernel: half the HBM traffic); accumulation f32
    hidden_states = jax.random.normal(
        k_hs, (L, B, S, H), dtype=jnp.float32).astype(jnp.bfloat16)
    # nn.Parameter(torch.ones((L,1,1,1)) / L)
    layer_combination = jnp.ones((L, 1, 1, 1), dtype=jnp.float32) / L
    # classifier = nn.Linear(H, N): weight (N, H), bias (N,)
    cls_w = jax.random.normal(k_w, (N, H), dtype=jnp.float32) * 0.05
    cls_b = jax.random.normal(k_b, (N,), dtype=jnp.float32) * 0.05
    labels = jax.random.randint(k_lab, (B, S), 0, N, dtype=jnp.int32)
    labels = labels.at[0, 0].set(-100)   # exercise ignore_index

    def reference(hs, lc, wcls, bcls, lab):
        Lr = hs.shape[0]
        n = wcls.shape[0]
        hs_f32 = hs.astype(jnp.float32)
        w_sm = jax.nn.softmax(lc.reshape(Lr), axis=0)
        combo = jnp.einsum("l,lbsh->bsh", w_sm, hs_f32)
        # mirror the kernel's classifier-weight quantization (hs dtype on the MXU)
        w_q = wcls.astype(hs.dtype).astype(jnp.float32)
        logits = combo @ w_q.T + bcls
        logp = jax.nn.log_softmax(logits.reshape(-1, n), axis=-1)
        lab_f = lab.reshape(-1)
        valid = lab_f != -100
        nll = -jnp.take_along_axis(logp, jnp.clip(lab_f, 0)[:, None], axis=-1)[:, 0]
        loss = jnp.sum(jnp.where(valid, nll, 0.0)) / jnp.sum(valid)
        return logits.reshape(lab.shape + (n,)), loss

    # training path (loss fused)
    out = token_classifier_layer_combo(hidden_states, layer_combination,
                                       cls_w, cls_b, labels)
    jax.block_until_ready(out)
    logits_ref, loss_ref = reference(hidden_states, layer_combination,
                                     cls_w, cls_b, labels)
    assert jnp.allclose(out["logits"], logits_ref, atol=2e-3, rtol=2e-3)
    assert jnp.allclose(out["loss"], loss_ref, atol=2e-3, rtol=2e-3)

    # inference path (no labels)
    out_inf = token_classifier_layer_combo(hidden_states, layer_combination,
                                           cls_w, cls_b)
    jax.block_until_ready(out_inf)
    assert jnp.allclose(out_inf["logits"], logits_ref, atol=2e-3, rtol=2e-3)

    # ragged case: T = 14 is not a tile multiple -> exercises the partial last
    # block (no hidden-state padding in HBM, only labels padded with -100)
    hs_r = hidden_states[:, :, :7, :]
    lab_r = labels[:, :7]
    out_r = token_classifier_layer_combo(hs_r, layer_combination, cls_w, cls_b, lab_r)
    jax.block_until_ready(out_r)
    logits_ref_r, loss_ref_r = reference(hs_r, layer_combination, cls_w, cls_b, lab_r)
    assert jnp.allclose(out_r["logits"], logits_ref_r, atol=2e-3, rtol=2e-3)
    assert jnp.allclose(out_r["loss"], loss_ref_r, atol=2e-3, rtol=2e-3)

    print("KERNEL_OK")
</pallas_src>

<mosaic_0001>
module attributes {stable_mosaic.version = 11 : i64} {
  func.func @combine_classify_loss_kernel(%arg0: i32, %arg1: memref<4xf32, #tpu.memory_space<smem>>, %arg2: memref<4x8x32xbf16, #tpu.memory_space<vmem>>, %arg3: memref<8x1xi32, #tpu.memory_space<vmem>>, %arg4: memref<32x128xbf16, #tpu.memory_space<vmem>>, %arg5: memref<1x128xf32, #tpu.memory_space<vmem>>, %arg6: memref<8x128xf32, #tpu.memory_space<vmem>>, %arg7: memref<1x1x128xf32, #tpu.memory_space<vmem>>) attributes {dimension_semantics = [#tpu.dimension_semantics<parallel>], iteration_bounds = array<i64: 2>, scalar_prefetch = 1 : i64, scratch_operands = 0 : i64, tpu.core_type = #tpu.core_type<tc>, window_params = [{transform_indices = @transform_0, window_bounds = array<i64: 4, 8, 32>}, {transform_indices = @transform_1, window_bounds = array<i64: 8, 1>}, {pipeline_mode = #tpu.pipeline_mode<synchronous>, transform_indices = @transform_2, window_bounds = array<i64: 32, 128>}, {pipeline_mode = #tpu.pipeline_mode<synchronous>, transform_indices = @transform_3, window_bounds = array<i64: 1, 128>}, {transform_indices = @transform_4, window_bounds = array<i64: 8, 128>}, {transform_indices = @transform_5, window_bounds = array<i64: 1, 1, 128>}]} {
    %c0 = arith.constant 0 : index
    %0 = memref.load %arg1[%c0] : memref<4xf32, #tpu.memory_space<smem>>
    %c0_0 = arith.constant 0 : index
    %c0_1 = arith.constant 0 : index
    %c0_2 = arith.constant 0 : index
    %1 = vector.load %arg2[%c0_0, %c0_1, %c0_2] : memref<4x8x32xbf16, #tpu.memory_space<vmem>>, vector<1x8x32xbf16>
    %2 = vector.shape_cast %1 : vector<1x8x32xbf16> to vector<8x32xbf16>
    %c0_3 = arith.constant 0 : index
    %c0_4 = arith.constant 0 : index
    %3 = vector.load %arg4[%c0_3, %c0_4] : memref<32x128xbf16, #tpu.memory_space<vmem>>, vector<32x128xbf16>
    %cst = arith.constant dense<0.000000e+00> : vector<8x128xf32>
    %4 = tpu.matmul %2, %3, %cst {dimension_numbers = #tpu.dot_dimension_numbers<[1], [0], [0], [1], [0, 0, 1, 1], [], []>} : vector<8x32xbf16>, vector<32x128xbf16>, vector<8x128xf32> -> vector<8x128xf32>
    %5 = vector.broadcast %0 : f32 to vector<8x128xf32>
    %6 = arith.mulf %5, %4 : vector<8x128xf32>
    %c1 = arith.constant 1 : index
    %7 = memref.load %arg1[%c1] : memref<4xf32, #tpu.memory_space<smem>>
    %c1_5 = arith.constant 1 : index
    %c0_6 = arith.constant 0 : index
    %c0_7 = arith.constant 0 : index
    %8 = vector.load %arg2[%c1_5, %c0_6, %c0_7] : memref<4x8x32xbf16, #tpu.memory_space<vmem>>, vector<1x8x32xbf16>
    %9 = vector.shape_cast %8 : vector<1x8x32xbf16> to vector<8x32xbf16>
    %c0_8 = arith.constant 0 : index
    %c0_9 = arith.constant 0 : index
    %10 = vector.load %arg4[%c0_8, %c0_9] : memref<32x128xbf16, #tpu.memory_space<vmem>>, vector<32x128xbf16>
    %cst_10 = arith.constant dense<0.000000e+00> : vector<8x128xf32>
    %11 = tpu.matmul %9, %10, %cst_10 {dimension_numbers = #tpu.dot_dimension_numbers<[1], [0], [0], [1], [0, 0, 1, 1], [], []>} : vector<8x32xbf16>, vector<32x128xbf16>, vector<8x128xf32> -> vector<8x128xf32>
    %12 = vector.broadcast %7 : f32 to vector<8x128xf32>
    %13 = arith.mulf %12, %11 : vector<8x128xf32>
    %14 = arith.addf %6, %13 : vector<8x128xf32>
    %c2 = arith.constant 2 : index
    %15 = memref.load %arg1[%c2] : memref<4xf32, #tpu.memory_space<smem>>
    %c2_11 = arith.constant 2 : index
    %c0_12 = arith.constant 0 : index
    %c0_13 = arith.constant 0 : index
    %16 = vector.load %arg2[%c2_11, %c0_12, %c0_13] : memref<4x8x32xbf16, #tpu.memory_space<vmem>>, vector<1x8x32xbf16>
    %17 = vector.shape_cast %16 : vector<1x8x32xbf16> to vector<8x32xbf16>
    %c0_14 = arith.constant 0 : index
    %c0_15 = arith.constant 0 : index
    %18 = vector.load %arg4[%c0_14, %c0_15] : memref<32x128xbf16, #tpu.memory_space<vmem>>, vector<32x128xbf16>
    %cst_16 = arith.constant dense<0.000000e+00> : vector<8x128xf32>
    %19 = tpu.matmul %17, %18, %cst_16 {dimension_numbers = #tpu.dot_dimension_numbers<[1], [0], [0], [1], [0, 0, 1, 1], [], []>} : vector<8x32xbf16>, vector<32x128xbf16>, vector<8x128xf32> -> vector<8x128xf32>
    %20 = vector.broadcast %15 : f32 to vector<8x128xf32>
    %21 = arith.mulf %20, %19 : vector<8x128xf32>
    %22 = arith.addf %14, %21 : vector<8x128xf32>
    %c3 = arith.constant 3 : index
    %23 = memref.load %arg1[%c3] : memref<4xf32, #tpu.memory_space<smem>>
    %c3_17 = arith.constant 3 : index
    %c0_18 = arith.constant 0 : index
    %c0_19 = arith.constant 0 : index
    %24 = vector.load %arg2[%c3_17, %c0_18, %c0_19] : memref<4x8x32xbf16, #tpu.memory_space<vmem>>, vector<1x8x32xbf16>
    %25 = vector.shape_cast %24 : vector<1x8x32xbf16> to vector<8x32xbf16>
    %c0_20 = arith.constant 0 : index
    %c0_21 = arith.constant 0 : index
    %26 = vector.load %arg4[%c0_20, %c0_21] : memref<32x128xbf16, #tpu.memory_space<vmem>>, vector<32x128xbf16>
    %cst_22 = arith.constant dense<0.000000e+00> : vector<8x128xf32>
    %27 = tpu.matmul %25, %26, %cst_22 {dimension_numbers = #tpu.dot_dimension_numbers<[1], [0], [0], [1], [0, 0, 1, 1], [], []>} : vector<8x32xbf16>, vector<32x128xbf16>, vector<8x128xf32> -> vector<8x128xf32>
    %28 = vector.broadcast %23 : f32 to vector<8x128xf32>
    %29 = arith.mulf %28, %27 : vector<8x128xf32>
    %30 = arith.addf %22, %29 : vector<8x128xf32>
    %c0_23 = arith.constant 0 : index
    %c0_24 = arith.constant 0 : index
    %31 = vector.load %arg5[%c0_23, %c0_24] : memref<1x128xf32, #tpu.memory_space<vmem>>, vector<1x128xf32>
    %32 = vector.broadcast %31 : vector<1x128xf32> to vector<8x128xf32>
    %33 = arith.addf %30, %32 : vector<8x128xf32>
    %c0_25 = arith.constant 0 : index
    %c0_26 = arith.constant 0 : index
    %34 = vector.load %arg6[%c0_25, %c0_26] : memref<8x128xf32, #tpu.memory_space<vmem>>, vector<8x128xf32>
    tpu.vector_store %arg6[%c0_25, %c0_26], %33 {strides = array<i32>} : memref<8x128xf32, #tpu.memory_space<vmem>>, vector<8x128xf32>,
    %c0_27 = arith.constant 0 : index
    %c0_28 = arith.constant 0 : index
    %35 = vector.load %arg3[%c0_27, %c0_28] : memref<8x1xi32, #tpu.memory_space<vmem>>, vector<8x1xi32>
    %cst_29 = arith.constant dense<0xFF800000> : vector<8xf32>
    %36 = vector.multi_reduction <maximumf>, %33, %cst_29 [1] : vector<8x128xf32> to vector<8xf32>
    %37 = vector.shape_cast %36 : vector<8xf32> to vector<8x1xf32>
    %38 = vector.broadcast %37 : vector<8x1xf32> to vector<8x128xf32>
    %39 = arith.subf %33, %38 : vector<8x128xf32>
    %40 = math.exp %39 : vector<8x128xf32>
    %cst_30 = arith.constant dense<0.000000e+00> : vector<8xf32>
    %41 = vector.multi_reduction <add>, %40, %cst_30 [1] : vector<8x128xf32> to vector<8xf32>
    %42 = vector.shape_cast %41 : vector<8xf32> to vector<8x1xf32>
    %43 = math.log %42 : vector<8x1xf32>
    %44 = arith.addf %43, %37 : vector<8x1xf32>
    %45 = tpu.iota {dimensions = array<i32: 1>} : vector<8x128xi32>
    %46 = vector.broadcast %35 : vector<8x1xi32> to vector<8x128xi32>
    %47 = arith.cmpi eq, %45, %46 : vector<8x128xi32>
    %cst_31 = arith.constant 0.000000e+00 : f32
    %48 = vector.broadcast %cst_31 : f32 to vector<8x128xf32>
    %49 = arith.select %47, %33, %48 : vector<8x128xi1>, vector<8x128xf32>
    %cst_32 = arith.constant dense<0.000000e+00> : vector<8xf32>
    %50 = vector.multi_reduction <add>, %49, %cst_32 [1] : vector<8x128xf32> to vector<8xf32>
    %51 = vector.shape_cast %50 : vector<8xf32> to vector<8x1xf32>
    %c-100_i32 = arith.constant -100 : i32
    %52 = vector.broadcast %c-100_i32 : i32 to vector<8x1xi32>
    %53 = arith.cmpi ne, %35, %52 : vector<8x1xi32>
    %54 = arith.subf %44, %51 : vector<8x1xf32>
    %cst_33 = arith.constant 0.000000e+00 : f32
    %55 = vector.broadcast %cst_33 : f32 to vector<8x1xf32>
    %56 = arith.select %53, %54, %55 : vector<8x1xi1>, vector<8x1xf32>
    %57 = vector.shape_cast %56 : vector<8x1xf32> to vector<1x8x1xf32>
    %cst_34 = arith.constant dense<0.000000e+00> : vector<1xf32>
    %58 = vector.multi_reduction <add>, %57, %cst_34 [1, 2] : vector<1x8x1xf32> to vector<1xf32>
    %59 = vector.shape_cast %58 : vector<1xf32> to vector<1x1x1xf32>
    %60 = vector.extract %59[0, 0, 0] : f32 from vector<1x1x1xf32>
    %61 = arith.extui %53 : vector<8x1xi1> to vector<8x1xi32>
    %62 = arith.sitofp %61 : vector<8x1xi32> to vector<8x1xf32>
    %63 = vector.shape_cast %62 : vector<8x1xf32> to vector<1x8x1xf32>
    %cst_35 = arith.constant dense<0.000000e+00> : vector<1xf32>
    %64 = vector.multi_reduction <add>, %63, %cst_35 [1, 2] : vector<1x8x1xf32> to vector<1xf32>
    %65 = vector.shape_cast %64 : vector<1xf32> to vector<1x1x1xf32>
    %66 = vector.extract %65[0, 0, 0] : f32 from vector<1x1x1xf32>
    %67 = tpu.iota {dimensions = array<i32: 2>} : vector<1x1x128xi32>
    %c0_i32 = arith.constant 0 : i32
    %68 = vector.broadcast %c0_i32 : i32 to vector<1x1x128xi32>
    %69 = arith.cmpi eq, %67, %68 : vector<1x1x128xi32>
    %cst_36 = arith.constant 0.000000e+00 : f32
    %70 = vector.broadcast %60 : f32 to vector<1x1x128xf32>
    %71 = vector.broadcast %cst_36 : f32 to vector<1x1x128xf32>
    %72 = arith.select %69, %70, %71 : vector<1x1x128xi1>, vector<1x1x128xf32>
    %c1_i32 = arith.constant 1 : i32
    %73 = vector.broadcast %c1_i32 : i32 to vector<1x1x128xi32>
    %74 = arith.cmpi eq, %67, %73 : vector<1x1x128xi32>
    %75 = vector.broadcast %66 : f32 to vector<1x1x128xf32>
    %76 = arith.select %74, %75, %72 : vector<1x1x128xi1>, vector<1x1x128xf32>
    %c0_37 = arith.constant 0 : index
    %c0_38 = arith.constant 0 : index
    %c0_39 = arith.constant 0 : index
    %77 = vector.load %arg7[%c0_37, %c0_38, %c0_39] : memref<1x1x128xf32, #tpu.memory_space<vmem>>, vector<1x1x128xf32>
    tpu.vector_store %arg7[%c0_37, %c0_38, %c0_39], %76 {strides = array<i32>} : memref<1x1x128xf32, #tpu.memory_space<vmem>>, vector<1x1x128xf32>,
    return
  }
  func.func @transform_0(%arg0: i32, %arg1: memref<4xf32, #tpu.memory_space<smem>>) -> (i32, i32, i32) {
    %c0_i32 = arith.constant 0 : i32
    %c0_i32_0 = arith.constant 0 : i32
    %c0_i32_1 = arith.constant 0 : i32
    return %c0_i32, %arg0, %c0_i32_0 : i32, i32, i32
  }
  func.func @transform_1(%arg0: i32, %arg1: memref<4xf32, #tpu.memory_space<smem>>) -> (i32, i32) {
    %c0_i32 = arith.constant 0 : i32
    %c0_i32_0 = arith.constant 0 : i32
    return %arg0, %c0_i32 : i32, i32
  }
  func.func @transform_2(%arg0: i32, %arg1: memref<4xf32, #tpu.memory_space<smem>>) -> (i32, i32) {
    %c0_i32 = arith.constant 0 : i32
    %c0_i32_0 = arith.constant 0 : i32
    %c0_i32_1 = arith.constant 0 : i32
    return %c0_i32, %c0_i32_0 : i32, i32
  }
  func.func @transform_3(%arg0: i32, %arg1: memref<4xf32, #tpu.memory_space<smem>>) -> (i32, i32) {
    %c0_i32 = arith.constant 0 : i32
    %c0_i32_0 = arith.constant 0 : i32
    %c0_i32_1 = arith.constant 0 : i32
    return %c0_i32, %c0_i32_0 : i32, i32
  }
  func.func @transform_4(%arg0: i32, %arg1: memref<4xf32, #tpu.memory_space<smem>>) -> (i32, i32) {
    %c0_i32 = arith.constant 0 : i32
    %c0_i32_0 = arith.constant 0 : i32
    return %arg0, %c0_i32 : i32, i32
  }
  func.func @transform_5(%arg0: i32, %arg1: memref<4xf32, #tpu.memory_space<smem>>) -> (i32, i32, i32) {
    %c0_i32 = arith.constant 0 : i32
    %c0_i32_0 = arith.constant 0 : i32
    %c0_i32_1 = arith.constant 0 : i32
    return %arg0, %c0_i32, %c0_i32_0 : i32, i32, i32
  }
}

</mosaic_0001>

<llo_original>
// kernel: token_classifier_layer_combo.1
$region0: #{token_classifier_layer_combo.1}
  #allocation0 [shape = 'u32[]', space=smem, size = 0x4, offset = 0x4, fixed_abs, tag = 'smem constant byte address 0x4 - core index']
  #allocation1 [shape = 'u32[144,128]{1,0:T(1,128)}', space=vmem, size = 0x12000, scoped, tag = 'internal scratch']
  #allocation2 [shape = 's32[1]{0}', space=sflag, size = 0x4, scoped, tag = 'scoped memory for token_classifier_layer_combo.1']
  #allocation3 [shape = 'u8[512]{0}', space=smem, size = 0x200, scoped, tag = 'prefetched SMEM operand 0']
  %s0 = inlined_call_operand.vmem [shape: f32[4], index: 0, kind: input, shape index: {}]
  %s1 = inlined_call_operand.vmem [shape: bf16[4,16,32], index: 1, kind: input, shape index: {}]
  %s2 = inlined_call_operand.vmem [shape: s32[16,1], index: 2, kind: input, shape index: {}]
  %s3 = inlined_call_operand.vmem [shape: bf16[32,128], index: 3, kind: input, shape index: {}]
  %s4 = inlined_call_operand.vmem [shape: f32[1,128], index: 4, kind: input, shape index: {}]
  %s5 = inlined_call_operand.vmem [shape: f32[16,128], index: 5, kind: output, shape index: {0}]
  %s6 = inlined_call_operand.vmem [shape: f32[2,1,128], index: 6, kind: output, shape index: {1}]
  %7 = xla_tuple %s5, %s6
  %s8 = sld [smem:[#allocation0]]
  $region98: #{token_classifier_layer_combo.1} parent=0
    _
  %s10 = ssub.s32 1, %s8
  %s11 = scalar_select 0, %s10, %s8
  %s12 = sshll.u32 %s0, 4
  %s13 = int_to_ptr.vmem [resolvable:$true] %s12
  %15 = dma.vmem_to_smem %s13, 16, [#allocation3], [#allocation2]
  %16 = dma.done [#allocation2], 16
  %17 = sfence
  $region1: #{token_classifier_layer_combo.1} parent=0
    #allocation4 [shape = 'u8[16384]{0}', space=vmem, size = 0x4000, scoped, tag = 'input window, operand 1']
    loop: start=0, step=1, limit=4
    $region2: #{token_classifier_layer_combo.1} parent=1 // loop_pre_header
      _
    $region3: #{token_classifier_layer_combo.1} parent=1 // loop_header
      %s19 = sphi 0, %s23
      %p20 = scmp.ge.s32.totalorder %s19, 4
      %s29 = sphi 0, %s31
      %s32 = sphi 0, %s29
      %s33 = sphi 0, %s32
      %s49 = sphi 0, %s33
      %s55 = sphi 0, %s57
      %s58 = sphi 0, %s55
      %s59 = sphi 0, %s58
      %s75 = sphi 0, %s59
      %s79 = sphi 0, %s79
      %s81 = sphi 0, %s79
      %s82 = sphi 0, %s81
      %s96 = sphi 0, %s82
      %s100 = sphi 0, %s100
      %s102 = sphi 0, %s100
      %s103 = sphi 0, %s102
      %s117 = sphi 0, %s103
      %s123 = sphi 0, %s125
      %s126 = sphi 0, %s123
      %s127 = sphi 0, %s126
      %s143 = sphi 0, %s127
      %s149 = sphi 0, %s151
      %s152 = sphi 0, %s149
      %s153 = sphi 0, %s152
      %s169 = sphi 0, %s153
    $region4: #{token_classifier_layer_combo.1} parent=1 // loop_header_branch
      %22 = sbr.rel (%p20) target = $region8
    $region5: #{token_classifier_layer_combo.1} parent=1 // loop_body
      %s24 = ssub.s32 %s19, 1
      %s25 = ssub.s32 %s19, 2
      %s26 = sadd.s32 %s19, 1
      %s27 = ssub.s32 %s19, %s26
      %p28 = scmp.eq.s32.totalorder %s27, 0
      %s30 = sadd.s32 %s29, 1
      %s31 = scalar_select %p28, %s29, %s30
      %p34 = pneg %p28
      %p35 = scmp.eq.s32.totalorder %s19, 1
      %p36 = por %p34, %p35
      %p37 = scmp.ne.s32.totalorder %s29, %s32
      %p38 = scmp.eq.s32.totalorder %s19, 0
      %p39 = por %p37, %p38
      %p40 = scmp.ne.s32.totalorder %s29, %s32
      %p41 = scmp.eq.s32.totalorder %s24, 1
      %p42 = por %p40, %p41
      %p43 = scmp.ne.s32.totalorder %s32, %s33
      %p44 = scmp.eq.s32.totalorder %s24, 0
      %p45 = por %p43, %p44
      %p46 = scmp.ne.s32.totalorder %s32, %s33
      %p47 = scmp.eq.s32.totalorder %s25, 1
      %p48 = por %p46, %p47
      %p50 = scmp.ne.s32.totalorder %s33, %s49
      %p51 = scmp.eq.s32.totalorder %s25, 0
      %p52 = por %p50, %p51
      %s53 = ssub.s32 %s19, %s26
      %p54 = scmp.eq.s32.totalorder %s53, 0
      %s56 = sadd.s32 %s55, 1
      %s57 = scalar_select %p54, %s55, %s56
      %p60 = pneg %p54
      %p61 = scmp.eq.s32.totalorder %s19, 1
      %p62 = por %p60, %p61
      %p63 = scmp.ne.s32.totalorder %s55, %s58
      %p64 = scmp.eq.s32.totalorder %s19, 0
      %p65 = por %p63, %p64
      %p66 = scmp.ne.s32.totalorder %s55, %s58
      %p67 = scmp.eq.s32.totalorder %s24, 1
      %p68 = por %p66, %p67
      %p69 = scmp.ne.s32.totalorder %s58, %s59
      %p70 = scmp.eq.s32.totalorder %s24, 0
      %p71 = por %p69, %p70
      %p72 = scmp.ne.s32.totalorder %s58, %s59
      %p73 = scmp.eq.s32.totalorder %s25, 1
      %p74 = por %p72, %p73
      %p76 = scmp.ne.s32.totalorder %s59, %s75
      %p77 = scmp.eq.s32.totalorder %s25, 0
      %p78 = por %p76, %p77
      %s80 = sadd.s32 %s79, 1
      %p83 = scmp.eq.s32.totalorder %s19, 1
      %p84 = scmp.ne.s32.totalorder %s79, %s81
      %p85 = scmp.eq.s32.totalorder %s19, 0
      %p86 = por %p84, %p85
      %p87 = scmp.ne.s32.totalorder %s79, %s81
      %p88 = scmp.eq.s32.totalorder %s24, 1
      %p89 = por %p87, %p88
      %p90 = scmp.ne.s32.totalorder %s81, %s82
      %p91 = scmp.eq.s32.totalorder %s24, 0
      %p92 = por %p90, %p91
      %p93 = scmp.ne.s32.totalorder %s81, %s82
      %p94 = scmp.eq.s32.totalorder %s25, 1
      %p95 = por %p93, %p94
      %p97 = scmp.ne.s32.totalorder %s82, %s96
      %p98 = scmp.eq.s32.totalorder %s25, 0
      %p99 = por %p97, %p98
      %s101 = sadd.s32 %s100, 1
      %p104 = scmp.eq.s32.totalorder %s19, 1
      %p105 = scmp.ne.s32.totalorder %s100, %s102
      %p106 = scmp.eq.s32.totalorder %s19, 0
      %p107 = por %p105, %p106
      %p108 = scmp.ne.s32.totalorder %s100, %s102
      %p109 = scmp.eq.s32.totalorder %s24, 1
      %p110 = por %p108, %p109
      %p111 = scmp.ne.s32.totalorder %s102, %s103
      %p112 = scmp.eq.s32.totalorder %s24, 0
      %p113 = por %p111, %p112
      %p114 = scmp.ne.s32.totalorder %s102, %s103
      %p115 = scmp.eq.s32.totalorder %s25, 1
      %p116 = por %p114, %p115
      %p118 = scmp.ne.s32.totalorder %s103, %s117
      %p119 = scmp.eq.s32.totalorder %s25, 0
      %p120 = por %p118, %p119
      %s121 = ssub.s32 %s19, %s26
      %p122 = scmp.eq.s32.totalorder %s121, 0
      %s124 = sadd.s32 %s123, 1
      %s125 = scalar_select %p122, %s123, %s124
      %p128 = pneg %p122
      %p129 = scmp.eq.s32.totalorder %s19, 1
      %p130 = por %p128, %p129
      %p131 = scmp.ne.s32.totalorder %s123, %s126
      %p132 = scmp.eq.s32.totalorder %s19, 0
      %p133 = por %p131, %p132
      %p134 = scmp.ne.s32.totalorder %s123, %s126
      %p135 = scmp.eq.s32.totalorder %s24, 1
      %p136 = por %p134, %p135
      %p137 = scmp.ne.s32.totalorder %s126, %s127
      %p138 = scmp.eq.s32.totalorder %s24, 0
      %p139 = por %p137, %p138
      %p140 = scmp.ne.s32.totalorder %s126, %s127
      %p141 = scmp.eq.s32.totalorder %s25, 1
      %p142 = por %p140, %p141
      %p144 = scmp.ne.s32.totalorder %s127, %s143
      %p145 = scmp.eq.s32.totalorder %s25, 0
      %p146 = por %p144, %p145
      %s147 = ssub.s32 %s19, %s26
      %p148 = scmp.eq.s32.totalorder %s147, 0
      %s150 = sadd.s32 %s149, 1
      %s151 = scalar_select %p148, %s149, %s150
      %p154 = pneg %p148
      %p155 = scmp.eq.s32.totalorder %s19, 1
      %p156 = por %p154, %p155
      %p157 = scmp.ne.s32.totalorder %s149, %s152
      %p158 = scmp.eq.s32.totalorder %s19, 0
      %p159 = por %p157, %p158
      %p160 = scmp.ne.s32.totalorder %s149, %s152
      %p161 = scmp.eq.s32.totalorder %s24, 1
      %p162 = por %p160, %p161
      %p163 = scmp.ne.s32.totalorder %s152, %s153
      %p164 = scmp.eq.s32.totalorder %s24, 0
      %p165 = por %p163, %p164
      %p166 = scmp.ne.s32.totalorder %s152, %s153
      %p167 = scmp.eq.s32.totalorder %s25, 1
      %p168 = por %p166, %p167
      %p170 = scmp.ne.s32.totalorder %s153, %s169
      %p171 = scmp.eq.s32.totalorder %s25, 0
      %p172 = por %p170, %p171
      %p173 = scmp.le.s32.totalorder 1, %s19
      %p174 = scmp.lt.s32.totalorder %s19, 3
      %p175 = pnand %p173, %p174
      %p176 = pneg %p175
      // Predicated region
      $region9: #{token_classifier_layer_combo.1} parent=5 // pred_check
        _
      $region10: #{token_classifier_layer_combo.1} parent=5 // pred_check_branch
        %178 = sbr.rel (%p175) target = $region12
      $region11: #{token_classifier_layer_combo.1} parent=5 // pred_region
        %s179 = ssub.s32 %s19, 1
        // Predicated region
        $region13: #{token_classifier_layer_combo.1} parent=11 // pred_check
          %p180 = pneg %p92
        $region14: #{token_classifier_layer_combo.1} parent=11 // pred_check_branch
          %182 = sbr.rel (%p180) target = $region16
        $region15: #{token_classifier_layer_combo.1} parent=11 // pred_region
          _
        $region16: #{token_classifier_layer_combo.1} parent=11 // pred_fallthru
          _
        // Predicated region
        $region17: #{token_classifier_layer_combo.1} parent=11 // pred_check
          %p183 = pneg %p113
        $region18: #{token_classifier_layer_combo.1} parent=11 // pred_check_branch
          %185 = sbr.rel (%p183) target = $region20
        $region19: #{token_classifier_layer_combo.1} parent=11 // pred_region
          _
        $region20: #{token_classifier_layer_combo.1} parent=11 // pred_fallthru
          _
      $region12: #{token_classifier_layer_combo.1} parent=5 // pred_fallthru
        _
      %p186 = scmp.lt.s32.totalorder %s19, 2
      // Predicated region
      $region21: #{token_classifier_layer_combo.1} parent=5 // pred_check
        %p187 = pneg %p186
      $region22: #{token_classifier_layer_combo.1} parent=5 // pred_check_branch
        %189 = sbr.rel (%p187) target = $region24
      $region23: #{token_classifier_layer_combo.1} parent=5 // pred_region
        // Predicated region
        $region25: #{token_classifier_layer_combo.1} parent=23 // pred_check
          %p190 = pneg %p39
        $region26: #{token_classifier_layer_combo.1} parent=23 // pred_check_branch
          %192 = sbr.rel (%p190) target = $region28
        $region27: #{token_classifier_layer_combo.1} parent=23 // pred_region
          %s193 = sand.u32 %s29, 1
          %s194 = sand.u32 %s29, 1
          %s195 = smul.addr %s194, 16
          %s196 = scalar_lea.vmem [#allocation4], %s195
          %s197 = smul.addr %s19, 4
          %s198 = scalar_lea.vmem %s1, %s197
          // Predicated region
          $region29: #{token_classifier_layer_combo.1} parent=27 // pred_check
            _
          $region30: #{token_classifier_layer_combo.1} parent=27 // pred_check_branch
            %200 = sbr.rel (0) target = $region32
          $region31: #{token_classifier_layer_combo.1} parent=27 // pred_region
            // Predicated region
            $region33: #{token_classifier_layer_combo.1} parent=31 // pred_check
              _
            $region34: #{token_classifier_layer_combo.1} parent=31 // pred_check_branch
              %202 = sbr.rel target = $region36
            $region35: #{token_classifier_layer_combo.1} parent=31 // pred_region
              // Predicated region
              $region48: #{token_classifier_layer_combo.1} parent=35 // pred_check
                _
              $region49: #{token_classifier_layer_combo.1} parent=35 // pred_check_branch
                %223 = sbr.rel (0) target = $region51
              $region50: #{token_classifier_layer_combo.1} parent=35 // pred_region
                loop: start=0, step=1, limit=1
                $region52: #{token_classifier_layer_combo.1} parent=50 // loop_pre_header
                  _
                $region53: #{token_classifier_layer_combo.1} parent=50 // loop_header
                  %s225 = sphi 0, %s229
                  %p226 = scmp.ge.s32.totalorder %s225, 1
                  %s230 = sphi %s198, %s198
                  %s231 = sphi %s196, %s196
                $region54: #{token_classifier_layer_combo.1} parent=50 // loop_header_branch
                  %228 = sbr.rel (%p226) target = $region58
                $region55: #{token_classifier_layer_combo.1} parent=50 // loop_body
                  _
                $region56: #{token_classifier_layer_combo.1} parent=50 // loop_footer
                  %s229 = sadd.s32 1, %s225
                $region57: #{token_classifier_layer_combo.1} parent=50 // loop_footer_branch
                  %224 = sbr.rel target = $region53
                $region58: #{token_classifier_layer_combo.1} parent=50 // loop_exit
                  _
                loop: start=0, step=1, limit=1
                $region59: #{token_classifier_layer_combo.1} parent=50 // loop_pre_header
                  _
                $region60: #{token_classifier_layer_combo.1} parent=50 // loop_header
                  %s234 = sphi 0, %s238
                  %p235 = scmp.ge.s32.totalorder %s234, 1
                  %s239 = sphi %s198, %s198
                  %s240 = sphi %s196, %s196
                $region61: #{token_classifier_layer_combo.1} parent=50 // loop_header_branch
                  %237 = sbr.rel (%p235) target = $region65
                $region62: #{token_classifier_layer_combo.1} parent=50 // loop_body
                  %v241 = vld [vmem:[%s239] sm:$0xf]
                  %242 = vst [vmem:[%s240] sm:$0xf] %v241
                  %v243 = vld [vmem:[%s239 + $0x8] sm:$0xf]
                  %244 = vst [vmem:[%s240 + $0x4] sm:$0xf] %v243
                  %v245 = vld [vmem:[%s239 + $0x10] sm:$0xf]
                  %246 = vst [vmem:[%s240 + $0x8] sm:$0xf] %v245
                  %v247 = vld [vmem:[%s239 + $0x18] sm:$0xf]
                  %248 = vst [vmem:[%s240 + $0xc] sm:$0xf] %v247
                $region63: #{token_classifier_layer_combo.1} parent=50 // loop_footer
                  %s238 = sadd.s32 1, %s234
                $region64: #{token_classifier_layer_combo.1} parent=50 // loop_footer_branch
                  %233 = sbr.rel target = $region60
                $region65: #{token_classifier_layer_combo.1} parent=50 // loop_exit
                  _
              $region51: #{token_classifier_layer_combo.1} parent=35 // pred_fallthru
                _
            $region36: #{token_classifier_layer_combo.1} parent=31 // pred_fallthru
              _
            // Predicated region
            $region37: #{token_classifier_layer_combo.1} parent=31 // pred_check
              _
            $region38: #{token_classifier_layer_combo.1} parent=31 // pred_check_branch
              %204 = sbr.rel (0) target = $region40
            $region39: #{token_classifier_layer_combo.1} parent=31 // pred_region
              loop: start=0, step=1, limit=1
              $region41: #{token_classifier_layer_combo.1} parent=39 // loop_pre_header
                _
              $region42: #{token_classifier_layer_combo.1} parent=39 // loop_header
                %s207 = sphi 0, %s211
                %p208 = scmp.ge.s32.totalorder %s207, 1
                %s212 = sphi %s198, %s198
                %s213 = sphi %s196, %s196
              $region43: #{token_classifier_layer_combo.1} parent=39 // loop_header_branch
                %210 = sbr.rel (%p208) target = $region47
              $region44: #{token_classifier_layer_combo.1} parent=39 // loop_body
                %v214 = vld [vmem:[%s212] sm:$0xf]
                %215 = vst [vmem:[%s213] sm:$0xf] %v214
                %v216 = vld [vmem:[%s212 + $0x8] sm:$0xf]
                %217 = vst [vmem:[%s213 + $0x4] sm:$0xf] %v216
                %v218 = vld [vmem:[%s212 + $0x10] sm:$0xf]
                %219 = vst [vmem:[%s213 + $0x8] sm:$0xf] %v218
                %v220 = vld [vmem:[%s212 + $0x18] sm:$0xf]
                %221 = vst [vmem:[%s213 + $0xc] sm:$0xf] %v220
              $region45: #{token_classifier_layer_combo.1} parent=39 // loop_footer
                %s211 = sadd.s32 1, %s207
              $region46: #{token_classifier_layer_combo.1} parent=39 // loop_footer_branch
                %206 = sbr.rel target = $region42
              $region47: #{token_classifier_layer_combo.1} parent=39 // loop_exit
                _
            $region40: #{token_classifier_layer_combo.1} parent=31 // pred_fallthru
              _
          $region32: #{token_classifier_layer_combo.1} parent=27 // pred_fallthru
            _
          %249 = vnop
        $region28: #{token_classifier_layer_combo.1} parent=23 // pred_fallthru
          _
        // Predicated region
        $region66: #{token_classifier_layer_combo.1} parent=23 // pred_check
          %p250 = pneg %p65
        $region67: #{token_classifier_layer_combo.1} parent=23 // pred_check_branch
          %252 = sbr.rel (%p250) target = $region69
        $region68: #{token_classifier_layer_combo.1} parent=23 // pred_region
          %p253 = scmp.lt.s32.totalorder %s19, 1
          %s254 = scalar_select %p253, %s19, 1
          %s255 = smul.addr %s254, 8
          %s256 = scalar_lea.vmem %s2, %s255
        $region69: #{token_classifier_layer_combo.1} parent=23 // pred_fallthru
          _
      $region24: #{token_classifier_layer_combo.1} parent=5 // pred_fallthru
        _
      %p257 = scmp.le.s32.totalorder 1, %s19
      %p258 = scmp.lt.s32.totalorder %s19, 3
      %p259 = pnand %p257, %p258
      %p260 = pneg %p259
      // Predicated region
      $region70: #{token_classifier_layer_combo.1} parent=5 // pred_check
        _
      $region71: #{token_classifier_layer_combo.1} parent=5 // pred_check_branch
        %262 = sbr.rel (%p259) target = $region73
      $region72: #{token_classifier_layer_combo.1} parent=5 // pred_region
        %s263 = ssub.s32 %s19, 1
        %s264 = sand.u32 %s32, 1
        %s265 = sand.u32 %s32, 1
        %s266 = smul.addr %s265, 16
        %s267 = scalar_lea.vmem [#allocation4], %s266
        // Predicated region
        $region74: #{token_classifier_layer_combo.1} parent=72 // pred_check
          %p268 = pneg %p45
        $region75: #{token_classifier_layer_combo.1} parent=72 // pred_check_branch
          %270 = sbr.rel (%p268) target = $region77
        $region76: #{token_classifier_layer_combo.1} parent=72 // pred_region
          _
        $region77: #{token_classifier_layer_combo.1} parent=72 // pred_fallthru
          _
        %s271 = sand.u32 %s32, 1
        %s272 = sand.u32 %s32, 1
        %s273 = smul.addr %s272, 16
        %s274 = scalar_lea.vmem [#allocation4], %s273
        %p275 = pneg %p45
        %p276 = pneg %p42
        %p277 = scmp.lt.s32.totalorder %s24, 1
        %s278 = scalar_select %p277, %s24, 1
        %s279 = smul.addr %s278, 8
        %s280 = scalar_lea.vmem %s2, %s279
        %p281 = pneg %p71
        %p282 = pneg %p68
        %p283 = pneg %p92
        %p284 = pneg %p89
        %p285 = pneg %p113
        %p286 = pneg %p110
        %p287 = pneg %p139
        %p288 = pneg %p136
        %p289 = scmp.lt.s32.totalorder %s24, 1
        %s290 = scalar_select %p289, %s24, 1
        %s291 = smul.addr %s290, 8
        %s292 = scalar_lea.vmem %s5, %s291
        %p293 = pneg %p165
        %p294 = pneg %p162
        %p295 = scmp.lt.s32.totalorder %s24, 1
        %s296 = scalar_select %p295, %s24, 1
        %s297 = scalar_lea.vmem %s6, %s296
        %p298 = scmp.lt.s32.totalorder %s24, 1
        %s299 = scalar_select %p298, %s24, 1
        %s300 = smul.addr %s299, 8
        %s301 = scalar_lea.vmem %s2, %s300
        %p302 = scmp.lt.s32.totalorder %s24, 1
        %s303 = scalar_select %p302, %s24, 1
        %s304 = smul.addr %s303, 8
        %s305 = scalar_lea.vmem %s5, %s304
        %p306 = scmp.lt.s32.totalorder %s24, 1
        %s307 = scalar_select %p306, %s24, 1
        %s308 = scalar_lea.vmem %s6, %s307
        %s310 = sld [smem:[#allocation3]]
        %v311 = vld [vmem:[%s267] sm:$0xf]
        %v312 = vld [vmem:[%s3] sm:$0xf]
        %v313 = vld [vmem:[%s3 + $0x4] sm:$0xf]
        %v314 = vld [vmem:[%s3 + $0x8] sm:$0xf]
        %v315 = vld [vmem:[%s3 + $0xc] sm:$0xf]
        %v320 = vunpack.c.l.b16 %v312
        %v321 = vunpack.c.l.b16 %v313
        %v322 = vunpack.c.l.b16 %v314
        %v323 = vunpack.c.l.b16 %v315
        %v324 = vpack.c.b16 %v321, %v320
        %v325 = vpack.c.b16 %v323, %v322
        %vm328 = vcmask 261120
        %v330 = vsel %vm328, %v311, 0
        %332 = vmatprep.subr.bf16.mxu0 0
        %333 = vmatpush1.bf16.msra.mxu0 %v324
        %334 = vmatprep.subr.bf16.mxu0 0
        %335 = vmatpush1.bf16.msra.mxu0 %v325
        %336 = vmatprep.subr.bf16.mxu0 0
        %337 = vmatpush1.bf16.msra.mxu0 0
        %338 = vmatprep.subr.bf16.mxu0 0
        %339 = vmatpush1.bf16.msra.mxu0 0
        %340 = vmatprep.subr.bf16.mxu0 0
        %341 = vmatpush1.bf16.msra.mxu0 0
        %342 = vmatprep.subr.bf16.mxu0 0
        %343 = vmatpush1.bf16.msra.mxu0 0
        %344 = vmatprep.subr.bf16.mxu0 0
        %345 = vmatpush1.bf16.msra.mxu0 0
        %346 = vmatprep.subr.bf16.mxu0 0
        %347 = vmatpush1.bf16.msra.mxu0 0
        %348 = vmatprep.subr.bf16.mxu0 0
        %349 = vmatpush1.bf16.msra.mxu0 0
        %350 = vmatprep.subr.bf16.mxu0 0
        %351 = vmatpush1.bf16.msra.mxu0 0
        %352 = vmatprep.subr.bf16.mxu0 0
        %353 = vmatpush1.bf16.msra.mxu0 0
        %354 = vmatprep.subr.bf16.mxu0 0
        %355 = vmatpush1.bf16.msra.mxu0 0
        %356 = vmatprep.subr.bf16.mxu0 0
        %357 = vmatpush1.bf16.msra.mxu0 0
        %358 = vmatprep.subr.bf16.mxu0 0
        %359 = vmatpush1.bf16.msra.mxu0 0
        %360 = vmatprep.subr.bf16.mxu0 0
        %361 = vmatpush1.bf16.msra.mxu0 0
        %362 = vmatprep.subr.bf16.mxu0 0
        %363 = vmatpush1.bf16.msra.mxu0 0
        %364 = vmatprep.mubr.bf16.mxu0 0
        %365 = vmatmul.mubr.bf16.gmra.mrb[0].mxu0 %v330
        %v366 = vpop.f32.mrb[0].mxu0
        %v367 = vadd.f32 0.0, %v366
        %v368 = vpop.f32.mrb[0].mxu0
        %v369 = vpop.f32.mrb[0].mxu0
        %v370 = vpop.f32.mrb[0].mxu0
        %371 = vdwg.mxu0
        %v372 = vstv %s310
        %v373 = vmul.f32 %v372, %v367
        %s374 = sld [smem:[#allocation3 + $0x1]]
        %s375 = scalar_lea.vmem %s267, 4 [#allocation4]
        %v376 = vld [vmem:[%s375] sm:$0xf]
        %v378 = vsel %vm328, %v376, 0
        %380 = vmatprep.subr.bf16.mxu0 0
        %381 = vmatpush1.bf16.msra.mxu0 %v324
        %382 = vmatprep.subr.bf16.mxu0 0
        %383 = vmatpush1.bf16.msra.mxu0 %v325
        %384 = vmatprep.subr.bf16.mxu0 0
        %385 = vmatpush1.bf16.msra.mxu0 0
        %386 = vmatprep.subr.bf16.mxu0 0
        %387 = vmatpush1.bf16.msra.mxu0 0
        %388 = vmatprep.subr.bf16.mxu0 0
        %389 = vmatpush1.bf16.msra.mxu0 0
        %390 = vmatprep.subr.bf16.mxu0 0
        %391 = vmatpush1.bf16.msra.mxu0 0
        %392 = vmatprep.subr.bf16.mxu0 0
        %393 = vmatpush1.bf16.msra.mxu0 0
        %394 = vmatprep.subr.bf16.mxu0 0
        %395 = vmatpush1.bf16.msra.mxu0 0
        %396 = vmatprep.subr.bf16.mxu0 0
        %397 = vmatpush1.bf16.msra.mxu0 0
        %398 = vmatprep.subr.bf16.mxu0 0
        %399 = vmatpush1.bf16.msra.mxu0 0
        %400 = vmatprep.subr.bf16.mxu0 0
        %401 = vmatpush1.bf16.msra.mxu0 0
        %402 = vmatprep.subr.bf16.mxu0 0
        %403 = vmatpush1.bf16.msra.mxu0 0
        %404 = vmatprep.subr.bf16.mxu0 0
        %405 = vmatpush1.bf16.msra.mxu0 0
        %406 = vmatprep.subr.bf16.mxu0 0
        %407 = vmatpush1.bf16.msra.mxu0 0
        %408 = vmatprep.subr.bf16.mxu0 0
        %409 = vmatpush1.bf16.msra.mxu0 0
        %410 = vmatprep.subr.bf16.mxu0 0
        %411 = vmatpush1.bf16.msra.mxu0 0
        %412 = vmatprep.mubr.bf16.mxu0 0
        %413 = vmatmul.mubr.bf16.gmra.mrb[0].mxu0 %v378
        %v414 = vpop.f32.mrb[0].mxu0
        %v415 = vadd.f32 0.0, %v414
        %v416 = vpop.f32.mrb[0].mxu0
        %v417 = vpop.f32.mrb[0].mxu0
        %v418 = vpop.f32.mrb[0].mxu0
        %419 = vdwg.mxu0
        %v420 = vstv %s374
        %v421 = vmul.f32 %v420, %v415
        %v422 = vadd.f32 %v373, %v421
        %s423 = sld [smem:[#allocation3 + $0x2]]
        %s424 = scalar_lea.vmem %s267, 8 [#allocation4]
        %v425 = vld [vmem:[%s424] sm:$0xf]
        %v427 = vsel %vm328, %v425, 0
        %429 = vmatprep.subr.bf16.mxu0 0
        %430 = vmatpush1.bf16.msra.mxu0 %v324
        %431 = vmatprep.subr.bf16.mxu0 0
        %432 = vmatpush1.bf16.msra.mxu0 %v325
        %433 = vmatprep.subr.bf16.mxu0 0
        %434 = vmatpush1.bf16.msra.mxu0 0
        %435 = vmatprep.subr.bf16.mxu0 0
        %436 = vmatpush1.bf16.msra.mxu0 0
        %437 = vmatprep.subr.bf16.mxu0 0
        %438 = vmatpush1.bf16.msra.mxu0 0
        %439 = vmatprep.subr.bf16.mxu0 0
        %440 = vmatpush1.bf16.msra.mxu0 0
        %441 = vmatprep.subr.bf16.mxu0 0
        %442 = vmatpush1.bf16.msra.mxu0 0
        %443 = vmatprep.subr.bf16.mxu0 0
        %444 = vmatpush1.bf16.msra.mxu0 0
        %445 = vmatprep.subr.bf16.mxu0 0
        %446 = vmatpush1.bf16.msra.mxu0 0
        %447 = vmatprep.subr.bf16.mxu0 0
        %448 = vmatpush1.bf16.msra.mxu0 0
        %449 = vmatprep.subr.bf16.mxu0 0
        %450 = vmatpush1.bf16.msra.mxu0 0
        %451 = vmatprep.subr.bf16.mxu0 0
        %452 = vmatpush1.bf16.msra.mxu0 0
        %453 = vmatprep.subr.bf16.mxu0 0
        %454 = vmatpush1.bf16.msra.mxu0 0
        %455 = vmatprep.subr.bf16.mxu0 0
        %456 = vmatpush1.bf16.msra.mxu0 0
        %457 = vmatprep.subr.bf16.mxu0 0
        %458 = vmatpush1.bf16.msra.mxu0 0
        %459 = vmatprep.subr.bf16.mxu0 0
        %460 = vmatpush1.bf16.msra.mxu0 0
        %461 = vmatprep.mubr.bf16.mxu0 0
        %462 = vmatmul.mubr.bf16.gmra.mrb[0].mxu0 %v427
        %v463 = vpop.f32.mrb[0].mxu0
        %v464 = vadd.f32 0.0, %v463
        %v465 = vpop.f32.mrb[0].mxu0
        %v466 = vpop.f32.mrb[0].mxu0
        %v467 = vpop.f32.mrb[0].mxu0
        %468 = vdwg.mxu0
        %v469 = vstv %s423
        %v470 = vmul.f32 %v469, %v464
        %v471 = vadd.f32 %v422, %v470
        %s472 = sld [smem:[#allocation3 + $0x3]]
        %s473 = scalar_lea.vmem %s267, 12 [#allocation4]
        %v474 = vld [vmem:[%s473] sm:$0xf]
        %v476 = vsel %vm328, %v474, 0
        %478 = vmatprep.subr.bf16.mxu0 0
        %479 = vmatpush1.bf16.msra.mxu0 %v324
        %480 = vmatprep.subr.bf16.mxu0 0
        %481 = vmatpush1.bf16.msra.mxu0 %v325
        %482 = vmatprep.subr.bf16.mxu0 0
        %483 = vmatpush1.bf16.msra.mxu0 0
        %484 = vmatprep.subr.bf16.mxu0 0
        %485 = vmatpush1.bf16.msra.mxu0 0
        %486 = vmatprep.subr.bf16.mxu0 0
        %487 = vmatpush1.bf16.msra.mxu0 0
        %488 = vmatprep.subr.bf16.mxu0 0
        %489 = vmatpush1.bf16.msra.mxu0 0
        %490 = vmatprep.subr.bf16.mxu0 0
        %491 = vmatpush1.bf16.msra.mxu0 0
        %492 = vmatprep.subr.bf16.mxu0 0
        %493 = vmatpush1.bf16.msra.mxu0 0
        %494 = vmatprep.subr.bf16.mxu0 0
        %495 = vmatpush1.bf16.msra.mxu0 0
        %496 = vmatprep.subr.bf16.mxu0 0
        %497 = vmatpush1.bf16.msra.mxu0 0
        %498 = vmatprep.subr.bf16.mxu0 0
        %499 = vmatpush1.bf16.msra.mxu0 0
        %500 = vmatprep.subr.bf16.mxu0 0
        %501 = vmatpush1.bf16.msra.mxu0 0
        %502 = vmatprep.subr.bf16.mxu0 0
        %503 = vmatpush1.bf16.msra.mxu0 0
        %504 = vmatprep.subr.bf16.mxu0 0
        %505 = vmatpush1.bf16.msra.mxu0 0
        %506 = vmatprep.subr.bf16.mxu0 0
        %507 = vmatpush1.bf16.msra.mxu0 0
        %508 = vmatprep.subr.bf16.mxu0 0
        %509 = vmatpush1.bf16.msra.mxu0 0
        %510 = vmatprep.mubr.bf16.mxu0 0
        %511 = vmatmul.mubr.bf16.gmra.mrb[0].mxu0 %v476
        %v512 = vpop.f32.mrb[0].mxu0
        %v513 = vadd.f32 0.0, %v512
        %v514 = vpop.f32.mrb[0].mxu0
        %v515 = vpop.f32.mrb[0].mxu0
        %v516 = vpop.f32.mrb[0].mxu0
        %517 = vdwg.mxu0
        %v518 = vstv %s472
        %v519 = vmul.f32 %v518, %v513
        %v520 = vadd.f32 %v471, %v519
        %v521 = vld [vmem:[%s4] sm:$0x1]
        %v523 = vlaneseq
        %v524 = vshrl.u32 %v523, 7
        %v525 = vsub.s32 0, %v524
        %v526 = vrot.slane %v521, %v525
        %v528 = vadd.f32 %v520, %v526
        %529 = vst [vmem:[%s305] sm:$0xff] %v528
        %v530 = vld [vmem:[%s301] sm:$0xff]
        %531 = vmax.xlane.f32.xlu0 %v528
        %v532 = vpop.xlane.xlu0 %531
        %v533 = vsub.f32 %v528, %v532
        %v534 = vmul.f32 %v533, 1.442695
        %v535 = vpow.pop %v534
        %536 = vadd.xlane.f32.xlu0 %v535
        %v537 = vpop.xlane.xlu0 %536
        %v538 = vlog2.pop %v537
        %v539 = vmul.f32 %v538, 0.6931472
        %v540 = vadd.f32 %v539, %v532
        %v541 = vlaneseq
        %v542 = vand.u32 %v541, 127
        %543 = vset.pattern.permute.xlu0 0
        %544 = vperm.xlu0 %543, %v530
        %v545 = vpop.permute.xlu0 %544
        %vm546 = vcmp.eq.s32.totalorder %v542, %v545
        %v547 = vsel %vm546, %v528, 0.0
        %548 = vadd.xlane.f32.xlu0 %v547
        %v549 = vpop.xlane.xlu0 %548
        %vm550 = vcmp.ne.s32.totalorder %v530, 4294967196
        %v551 = vsub.f32 %v540, %v549
        %v552 = vsel %vm550, %v551, 0.0
        %vm553 = vcmask 7168
        %v554 = vsel %vm553, %v552, 0.0
        %555 = vadd.xlane.f32.xlu0 %v554
        %v556 = vpop.xlane.xlu0 %555
        %v557 = vrot.slane %v556, 4
        %v558 = vadd.f32 %v556, %v557
        %v559 = vrot.slane %v558, 2
        %v560 = vadd.f32 %v558, %v559
        %v561 = vrot.slane %v560, 1
        %v562 = vadd.f32 %v560, %v561
        %s563 = vtos %v562
        %v564 = vsel %vm550, 1, 0
        %v565 = vcvt.s32.f32 %v564
        %v566 = vsel %vm553, %v565, 0.0
        %567 = vadd.xlane.f32.xlu0 %v566
        %v568 = vpop.xlane.xlu0 %567
        %v569 = vrot.slane %v568, 4
        %v570 = vadd.f32 %v568, %v569
        %v571 = vrot.slane %v570, 2
        %v572 = vadd.f32 %v570, %v571
        %v573 = vrot.slane %v572, 1
        %v574 = vadd.f32 %v572, %v573
        %s575 = vtos %v574
        %vm576 = vcmp.eq.s32.totalorder %v542, 0
        %v577 = vstv %s563
        %v578 = vsel %vm576, %v577, 0.0
        %vm579 = vcmp.eq.s32.totalorder %v542, 1
        %v580 = vstv %s575
        %v581 = vsel %vm579, %v580, %v578
        %582 = vst [vmem:[%s308] sm:$0x1] %v581
        %p583 = scmp.lt.s32.totalorder %s24, 1
        %s584 = scalar_select %p583, %s24, 1
        %s585 = smul.addr %s584, 8
        %s586 = scalar_lea.vmem %s5, %s585
        %p587 = scmp.lt.s32.totalorder %s24, 1
        %s588 = scalar_select %p587, %s24, 1
        %s589 = scalar_lea.vmem %s6, %s588
        // Predicated region
        $region78: #{token_classifier_layer_combo.1} parent=72 // pred_check
          %p590 = pneg %p136
        $region79: #{token_classifier_layer_combo.1} parent=72 // pred_check_branch
          %592 = sbr.rel (%p590) target = $region81
        $region80: #{token_classifier_layer_combo.1} parent=72 // pred_region
          _
        $region81: #{token_classifier_layer_combo.1} parent=72 // pred_fallthru
          _
        // Predicated region
        $region82: #{token_classifier_layer_combo.1} parent=72 // pred_check
          %p593 = pneg %p162
        $region83: #{token_classifier_layer_combo.1} parent=72 // pred_check_branch
          %595 = sbr.rel (%p593) target = $region85
        $region84: #{token_classifier_layer_combo.1} parent=72 // pred_region
          _
        $region85: #{token_classifier_layer_combo.1} parent=72 // pred_fallthru
          _
      $region73: #{token_classifier_layer_combo.1} parent=5 // pred_fallthru
        _
      %p596 = scmp.le.s32.totalorder 2, %s19
      // Predicated region
      $region86: #{token_classifier_layer_combo.1} parent=5 // pred_check
        %p597 = pneg %p596
      $region87: #{token_classifier_layer_combo.1} parent=5 // pred_check_branch
        %599 = sbr.rel (%p597) target = $region89
      $region88: #{token_classifier_layer_combo.1} parent=5 // pred_region
        %s600 = ssub.s32 %s19, 2
        // Predicated region
        $region90: #{token_classifier_layer_combo.1} parent=88 // pred_check
          %p601 = pneg %p142
        $region91: #{token_classifier_layer_combo.1} parent=88 // pred_check_branch
          %603 = sbr.rel (%p601) target = $region93
        $region92: #{token_classifier_layer_combo.1} parent=88 // pred_region
          %p604 = scmp.lt.s32.totalorder %s25, 1
          %s605 = scalar_select %p604, %s25, 1
          %s606 = smul.addr %s605, 8
          %s607 = scalar_lea.vmem %s5, %s606
        $region93: #{token_classifier_layer_combo.1} parent=88 // pred_fallthru
          _
        // Predicated region
        $region94: #{token_classifier_layer_combo.1} parent=88 // pred_check
          %p608 = pneg %p168
        $region95: #{token_classifier_layer_combo.1} parent=88 // pred_check_branch
          %610 = sbr.rel (%p608) target = $region97
        $region96: #{token_classifier_layer_combo.1} parent=88 // pred_region
          %p611 = scmp.lt.s32.totalorder %s25, 1
          %s612 = scalar_select %p611, %s25, 1
          %s613 = scalar_lea.vmem %s6, %s612
        $region97: #{token_classifier_layer_combo.1} parent=88 // pred_fallthru
          _
      $region89: #{token_classifier_layer_combo.1} parent=5 // pred_fallthru
        _
    $region6: #{token_classifier_layer_combo.1} parent=1 // loop_footer
      %s23 = sadd.s32 1, %s19
    $region7: #{token_classifier_layer_combo.1} parent=1 // loop_footer_branch
      %18 = sbr.rel target = $region3
    $region8: #{token_classifier_layer_combo.1} parent=1 // loop_exit
      _

</llo_original>
